<compile_context>
chip_gen: v5e
topology: v5e:2x2
jax: 0.10.0
libtpu: 0.0.40
codegen_flags: <defaults>
</compile_context>

<pallas_src>
import functools

import jax
import jax.numpy as jnp
from jax.experimental import pallas as pl
from jax.experimental.pallas import tpu as pltpu


def _round_up(a, b):
    return ((a + b - 1) // b) * b


# ----------------------------------------------------------------------------
# Kernel: one (tm, tn) output tile, accumulated over the K grid axis.
#   x_ref: (tm, tk)   activations
#   w_ref: (tk, tn)   weight, pre-transposed to (In, Out) layout
#   b_ref: (1,  tn)   bias
#   o_ref: (tm, tn)   f32 output tile; block index ignores k -> resident
#                     across the K axis, used directly as the accumulator.
# ----------------------------------------------------------------------------
def linear_kernel(x_ref, w_ref, b_ref, o_ref):
    k = pl.program_id(2)

    @pl.when(k == 0)
    def _():
        o_ref[...] = jnp.zeros_like(o_ref)

    o_ref[...] += jnp.dot(
        x_ref[...], w_ref[...], preferred_element_type=jnp.float32
    )

    @pl.when(k == pl.num_programs(2) - 1)
    def _():
        o_ref[...] += b_ref[...]


# ----------------------------------------------------------------------------
# Tile selection (parameter-side dims only, so it can be done once at setup).
# ----------------------------------------------------------------------------
def _choose_param_tiles(in_dim, out_dim):
    # K (contraction) axis: lane-dense 128-multiple, big tk => fewer, larger
    # weight DMAs (the dominant lever in the memory-bound small-batch regime).
    kp0 = _round_up(in_dim, 128)
    tk = min(2048, kp0)
    kp = _round_up(in_dim, tk)

    # N (output) axis: lane-dense 128-multiple.
    np0 = _round_up(out_dim, 128)
    tn = min(512, np0)
    # v7x has 2 TensorCores sharded over "parallel" grid axes; make sure the
    # N axis has >= 2 blocks when it would otherwise be a single block (only
    # possible if the padded Out extent is >= 256).
    if np0 // tn < 2 and np0 >= 256:
        tn = max(128, ((np0 // 2) // 128) * 128)
    np_ = _round_up(out_dim, tn)
    return tn, tk, np_, kp


def _choose_tm(batch):
    return min(512, _round_up(batch, 8))


# ----------------------------------------------------------------------------
# Forward (jitted).  Weight arrives already transposed/padded to (Kp, Np),
# bias already padded to (1, Np) — only the activations are padded per call.
# ----------------------------------------------------------------------------
@functools.partial(jax.jit, static_argnames=("out_dim", "tn", "tk"))
def _linear_fwd(x, w_kn, b_1n, out_dim, tn, tk):
    B, in_dim = x.shape
    Kp, Np = w_kn.shape

    tm = _choose_tm(B)
    Mp = _round_up(B, tm)

    if Mp != B or Kp != in_dim:
        xp = jnp.pad(x, ((0, Mp - B), (0, Kp - in_dim)))
    else:
        xp = x

    grid = (Mp // tm, Np // tn, Kp // tk)
    n_i, n_j, _ = grid

    # Double-buffered x/w blocks + resident output block (+ bias), with slack.
    working = 4 * (2 * tm * tk + 2 * tk * tn + 2 * tm * tn + 2 * tn)
    vmem_limit = min(64 * 1024 * 1024, max(32 * 1024 * 1024, int(working * 1.5)))

    # Truthful advisory estimate: x is re-read per N block, w per M block.
    cost = pl.CostEstimate(
        flops=2 * Mp * Np * Kp,
        transcendentals=0,
        bytes_accessed=4 * (Mp * Kp * n_j + Kp * Np * n_i + Np * n_i + Mp * Np),
    )

    yp = pl.pallas_call(
        linear_kernel,
        out_shape=jax.ShapeDtypeStruct((Mp, Np), jnp.float32),
        grid_spec=pltpu.PrefetchScalarGridSpec(
            num_scalar_prefetch=0,
            grid=grid,
            in_specs=[
                pl.BlockSpec((tm, tk), lambda i, j, k: (i, k)),   # x tile
                pl.BlockSpec((tk, tn), lambda i, j, k: (k, j)),   # w tile (K, N)
                pl.BlockSpec((1, tn), lambda i, j, k: (0, j)),    # bias tile
            ],
            out_specs=pl.BlockSpec((tm, tn), lambda i, j, k: (i, j)),
        ),
        compiler_params=pltpu.CompilerParams(
            dimension_semantics=("parallel", "parallel", "arbitrary"),
            vmem_limit_bytes=vmem_limit,
        ),
        cost_estimate=cost,
    )(xp, w_kn, b_1n)

    return yp[:B, :out_dim]


# ----------------------------------------------------------------------------
# Model wrapper: does the one-time parameter layout work (transpose + pad) at
# construction, mirroring nn.Linear's forward at call time.
# ----------------------------------------------------------------------------
class PallasLinear:
    def __init__(self, weight, bias):
        out_dim, in_dim = weight.shape
        assert bias.shape == (out_dim,)
        self.in_dim, self.out_dim = in_dim, out_dim

        tn, tk, Np, Kp = _choose_param_tiles(in_dim, out_dim)
        self.tn, self.tk = tn, tk

        # (Out, In) -> (In, Out), padded once to (Kp, Np). Padded K rows are
        # zero (contribute nothing to the dot); padded N cols are sliced off.
        w_t = jnp.asarray(weight, jnp.float32).T
        if Kp != in_dim or Np != out_dim:
            w_t = jnp.pad(w_t, ((0, Kp - in_dim), (0, Np - out_dim)))
        self.w_kn = w_t

        b = jnp.asarray(bias, jnp.float32)
        if Np != out_dim:
            b = jnp.pad(b, (0, Np - out_dim))
        self.b_1n = b.reshape(1, Np)

    def __call__(self, x):
        return _linear_fwd(x, self.w_kn, self.b_1n, self.out_dim, self.tn, self.tk)


if __name__ == "__main__":
    input_dim, output_dim, batch = 32, 16, 8

    key = jax.random.PRNGKey(0)
    kx, kw, kb = jax.random.split(key, 3)

    # Deterministic synthetic parameters, same shapes as nn.Linear(32, 16).
    x = jax.random.normal(kx, (batch, input_dim), dtype=jnp.float32)
    weight = jax.random.normal(kw, (output_dim, input_dim), dtype=jnp.float32) * 0.1
    bias = jax.random.normal(kb, (output_dim,), dtype=jnp.float32) * 0.1

    model = PallasLinear(weight, bias)
    y = model(x)
    y = jax.block_until_ready(y)

    # Reference check against plain JAX (same semantics as torch nn.Linear).
    y_ref = x @ weight.T + bias
    assert y.shape == (batch, output_dim)
    assert jnp.allclose(y, y_ref, atol=1e-5, rtol=1e-5)

    print("KERNEL_OK")
</pallas_src>

<mosaic_0001>
module attributes {stable_mosaic.version = 11 : i64} {
  func.func @linear_kernel(%arg0: i32, %arg1: i32, %arg2: i32, %arg3: memref<8x128xf32, #tpu.memory_space<vmem>>, %arg4: memref<128x128xf32, #tpu.memory_space<vmem>>, %arg5: memref<1x128xf32, #tpu.memory_space<vmem>>, %arg6: memref<8x128xf32, #tpu.memory_space<vmem>>) attributes {dimension_semantics = [#tpu.dimension_semantics<parallel>, #tpu.dimension_semantics<parallel>, #tpu.dimension_semantics<arbitrary>], iteration_bounds = array<i64: 1, 1, 1>, scalar_prefetch = 0 : i64, scratch_operands = 0 : i64, tpu.core_type = #tpu.core_type<tc>, window_params = [{transform_indices = @transform_0, window_bounds = array<i64: 8, 128>}, {transform_indices = @transform_1, window_bounds = array<i64: 128, 128>}, {transform_indices = @transform_2, window_bounds = array<i64: 1, 128>}, {transform_indices = @transform_3, window_bounds = array<i64: 8, 128>}]} {
    %c0_i32 = arith.constant 0 : i32
    %0 = arith.cmpi eq, %arg2, %c0_i32 : i32
    %1 = arith.extui %0 : i1 to i32
    %c0_i32_0 = arith.constant 0 : i32
    %2 = arith.cmpi ne, %1, %c0_i32_0 : i32
    scf.if %2 {
      %cst_10 = arith.constant 0.000000e+00 : f32
      %12 = vector.broadcast %cst_10 : f32 to vector<8x128xf32>
      %c0_11 = arith.constant 0 : index
      %c0_12 = arith.constant 0 : index
      %13 = vector.load %arg6[%c0_11, %c0_12] : memref<8x128xf32, #tpu.memory_space<vmem>>, vector<8x128xf32>
      tpu.vector_store %arg6[%c0_11, %c0_12], %12 {strides = array<i32>} : memref<8x128xf32, #tpu.memory_space<vmem>>, vector<8x128xf32>,
    } else {
    }
    %c0 = arith.constant 0 : index
    %c0_1 = arith.constant 0 : index
    %3 = vector.load %arg6[%c0, %c0_1] : memref<8x128xf32, #tpu.memory_space<vmem>>, vector<8x128xf32>
    %c0_2 = arith.constant 0 : index
    %c0_3 = arith.constant 0 : index
    %4 = vector.load %arg3[%c0_2, %c0_3] : memref<8x128xf32, #tpu.memory_space<vmem>>, vector<8x128xf32>
    %c0_4 = arith.constant 0 : index
    %c0_5 = arith.constant 0 : index
    %5 = vector.load %arg4[%c0_4, %c0_5] : memref<128x128xf32, #tpu.memory_space<vmem>>, vector<128x128xf32>
    %cst = arith.constant dense<0.000000e+00> : vector<8x128xf32>
    %6 = tpu.matmul %4, %5, %cst {dimension_numbers = #tpu.dot_dimension_numbers<[1], [0], [0], [1], [0, 0, 1, 1], [], []>} : vector<8x128xf32>, vector<128x128xf32>, vector<8x128xf32> -> vector<8x128xf32>
    %7 = arith.addf %3, %6 : vector<8x128xf32>
    %c0_6 = arith.constant 0 : index
    %c0_7 = arith.constant 0 : index
    %8 = vector.load %arg6[%c0_6, %c0_7] : memref<8x128xf32, #tpu.memory_space<vmem>>, vector<8x128xf32>
    tpu.vector_store %arg6[%c0_6, %c0_7], %7 {strides = array<i32>} : memref<8x128xf32, #tpu.memory_space<vmem>>, vector<8x128xf32>,
    %c0_i32_8 = arith.constant 0 : i32
    %9 = arith.cmpi eq, %arg2, %c0_i32_8 : i32
    %10 = arith.extui %9 : i1 to i32
    %c0_i32_9 = arith.constant 0 : i32
    %11 = arith.cmpi ne, %10, %c0_i32_9 : i32
    scf.if %11 {
      %c0_10 = arith.constant 0 : index
      %c0_11 = arith.constant 0 : index
      %12 = vector.load %arg6[%c0_10, %c0_11] : memref<8x128xf32, #tpu.memory_space<vmem>>, vector<8x128xf32>
      %c0_12 = arith.constant 0 : index
      %c0_13 = arith.constant 0 : index
      %13 = vector.load %arg5[%c0_12, %c0_13] : memref<1x128xf32, #tpu.memory_space<vmem>>, vector<1x128xf32>
      %14 = vector.broadcast %13 : vector<1x128xf32> to vector<8x128xf32>
      %15 = arith.addf %12, %14 : vector<8x128xf32>
      %c0_14 = arith.constant 0 : index
      %c0_15 = arith.constant 0 : index
      %16 = vector.load %arg6[%c0_14, %c0_15] : memref<8x128xf32, #tpu.memory_space<vmem>>, vector<8x128xf32>
      tpu.vector_store %arg6[%c0_14, %c0_15], %15 {strides = array<i32>} : memref<8x128xf32, #tpu.memory_space<vmem>>, vector<8x128xf32>,
    } else {
    }
    return
  }
  func.func @transform_0(%arg0: i32, %arg1: i32, %arg2: i32) -> (i32, i32) {
    %c0_i32 = arith.constant 0 : i32
    return %arg0, %arg2 : i32, i32
  }
  func.func @transform_1(%arg0: i32, %arg1: i32, %arg2: i32) -> (i32, i32) {
    %c0_i32 = arith.constant 0 : i32
    return %arg2, %arg1 : i32, i32
  }
  func.func @transform_2(%arg0: i32, %arg1: i32, %arg2: i32) -> (i32, i32) {
    %c0_i32 = arith.constant 0 : i32
    %c0_i32_0 = arith.constant 0 : i32
    return %c0_i32, %arg1 : i32, i32
  }
  func.func @transform_3(%arg0: i32, %arg1: i32, %arg2: i32) -> (i32, i32) {
    %c0_i32 = arith.constant 0 : i32
    return %arg0, %arg1 : i32, i32
  }
}

</mosaic_0001>

<llo_original>
// kernel: _linear_fwd.1
$region0: #{_linear_fwd.1}
  #allocation0 [shape = 'u32[]', space=smem, size = 0x4, offset = 0x4, fixed_abs, tag = 'smem constant byte address 0x4 - core index']
  #allocation1 [shape = 'u32[72,128]{1,0:T(1,128)}', space=vmem, size = 0x9000, scoped, tag = 'internal scratch']
  %s0 = inlined_call_operand.vmem [shape: f32[8,128], index: 0, kind: input, shape index: {}]
  %s1 = inlined_call_operand.hbm [shape: f32[128,128], index: 1, kind: input, shape index: {}]
  %s2 = inlined_call_operand.vmem [shape: f32[1,128], index: 2, kind: input, shape index: {}]
  %s3 = inlined_call_operand.hbm [shape: f32[8,128], index: 3, kind: output, shape index: {}]
  %s4 = sld [smem:[#allocation0]]
  $region34: #{_linear_fwd.1} parent=0
    _
  %s6 = ssub.s32 1, %s4
  %s7 = scalar_select 0, %s6, %s4
  $region1: #{_linear_fwd.1} parent=0
    #allocation2 [shape = 'u8[65536]{0}', space=vmem, size = 0x10000, scoped, tag = 'input window, operand 1, single buffered']
    #allocation3 [shape = 's32[1]{0}', space=sflag, size = 0x4, scoped, tag = 'scoped memory for _linear_fwd.1']
    #allocation4 [shape = 's32[1]{0}', space=sflag, size = 0x4, scoped, tag = 'scoped memory for _linear_fwd.1']
    #allocation5 [shape = 'u8[4096]{0}', space=vmem, size = 0x1000, scoped, tag = 'output window, operand 0, single buffered']
    %8 = vsyncpa [#allocation3], 0
    %9 = vsyncpa [#allocation4], 0
    // Predicated region
    $region2: #{_linear_fwd.1} parent=1 // pred_check
      _
    $region3: #{_linear_fwd.1} parent=1 // pred_check_branch
      %11 = sbr.rel (0) target = $region5
    $region4: #{_linear_fwd.1} parent=1 // pred_region
      _
    $region5: #{_linear_fwd.1} parent=1 // pred_fallthru
      _
    // Predicated region
    $region6: #{_linear_fwd.1} parent=1 // pred_check
      _
    $region7: #{_linear_fwd.1} parent=1 // pred_check_branch
      %13 = sbr.rel (0) target = $region9
    $region8: #{_linear_fwd.1} parent=1 // pred_region
      %15 = vsyncadd [#allocation3], 0
      %s16 = sshll.u32 %s1, 4
      %s17 = int_to_ptr.hbm [resolvable:$true] %s16
      %s18 = sshll.u32 [#allocation2], 4
      %s19 = int_to_ptr.vmem [resolvable:$true] %s18
      %24 = dma.hbm_to_vmem [thread:$0]  %s17, 2048, %s19, [#allocation3], 128, 128, 8
    $region9: #{_linear_fwd.1} parent=1 // pred_fallthru
      _
    // Predicated region
    $region10: #{_linear_fwd.1} parent=1 // pred_check
      _
    $region11: #{_linear_fwd.1} parent=1 // pred_check_branch
      %26 = sbr.rel (0) target = $region13
    $region12: #{_linear_fwd.1} parent=1 // pred_region
      _
    $region13: #{_linear_fwd.1} parent=1 // pred_fallthru
      _
    // Predicated region
    $region14: #{_linear_fwd.1} parent=1 // pred_check
      _
    $region15: #{_linear_fwd.1} parent=1 // pred_check_branch
      %28 = sbr.rel (0) target = $region17
    $region16: #{_linear_fwd.1} parent=1 // pred_region
      %30 = dma.done [#allocation3], 2048
    $region17: #{_linear_fwd.1} parent=1 // pred_fallthru
      _
    %p31 = scmp.eq.s32.totalorder 0, 0
    // Predicated region
    $region18: #{_linear_fwd.1} parent=1 // pred_check
      %p32 = pneg %p31
    $region19: #{_linear_fwd.1} parent=1 // pred_check_branch
      %34 = sbr.rel (%p32) target = $region21
    $region20: #{_linear_fwd.1} parent=1 // pred_region
      %35 = vst [vmem:[#allocation5] sm:$0xff] 0.0
    $region21: #{_linear_fwd.1} parent=1 // pred_fallthru
      _
    %v36 = vld [vmem:[#allocation5] sm:$0xff]
    %v37 = vld [vmem:[%s0] sm:$0xff]
    %v38 = vld [vmem:[#allocation2] sm:$0xff]
    %v39 = vld [vmem:[#allocation2 + $0x8] sm:$0xff]
    %v40 = vld [vmem:[#allocation2 + $0x10] sm:$0xff]
    %v41 = vld [vmem:[#allocation2 + $0x18] sm:$0xff]
    %v42 = vld [vmem:[#allocation2 + $0x20] sm:$0xff]
    %v43 = vld [vmem:[#allocation2 + $0x28] sm:$0xff]
    %v44 = vld [vmem:[#allocation2 + $0x30] sm:$0xff]
    %v45 = vld [vmem:[#allocation2 + $0x38] sm:$0xff]
    %v46 = vld [vmem:[#allocation2 + $0x40] sm:$0xff]
    %v47 = vld [vmem:[#allocation2 + $0x48] sm:$0xff]
    %v48 = vld [vmem:[#allocation2 + $0x50] sm:$0xff]
    %v49 = vld [vmem:[#allocation2 + $0x58] sm:$0xff]
    %v50 = vld [vmem:[#allocation2 + $0x60] sm:$0xff]
    %v51 = vld [vmem:[#allocation2 + $0x68] sm:$0xff]
    %v52 = vld [vmem:[#allocation2 + $0x70] sm:$0xff]
    %v53 = vld [vmem:[#allocation2 + $0x78] sm:$0xff]
    %54 = vmatpush.msra.mxu0 %v53
    %55 = vmatpush.msra.mxu0 %v52
    %56 = vmatpush.msra.mxu0 %v51
    %57 = vmatpush.msra.mxu0 %v50
    %58 = vmatpush.msra.mxu0 %v49
    %59 = vmatpush.msra.mxu0 %v48
    %60 = vmatpush.msra.mxu0 %v47
    %61 = vmatpush.msra.mxu0 %v46
    %62 = vmatpush.msra.mxu0 %v45
    %63 = vmatpush.msra.mxu0 %v44
    %64 = vmatpush.msra.mxu0 %v43
    %65 = vmatpush.msra.mxu0 %v42
    %66 = vmatpush.msra.mxu0 %v41
    %67 = vmatpush.msra.mxu0 %v40
    %68 = vmatpush.msra.mxu0 %v39
    %69 = vmatpush.msra.mxu0 %v38
    %70 = vmatmul.f32.gmra.mxu0 %v37
    %v71 = vpop.f32.mrf.mxu0
    %v72 = vadd.f32 0.0, %v71
    %73 = vdwg.mxu0
    %v74 = vadd.f32 %v36, %v72
    %75 = vst [vmem:[#allocation5] sm:$0xff] %v74
    // Predicated region
    $region22: #{_linear_fwd.1} parent=1 // pred_check
      %p76 = pneg %p31
    $region23: #{_linear_fwd.1} parent=1 // pred_check_branch
      %78 = sbr.rel (%p76) target = $region25
    $region24: #{_linear_fwd.1} parent=1 // pred_region
      %v79 = vld [vmem:[#allocation5] sm:$0xff]
      %v80 = vld [vmem:[%s2] sm:$0x1]
      %v82 = vperm.slane %v80, 0
      %v84 = vadd.f32 %v79, %v82
      %85 = vst [vmem:[#allocation5] sm:$0xff] %v84
    $region25: #{_linear_fwd.1} parent=1 // pred_fallthru
      _
    // Predicated region
    $region26: #{_linear_fwd.1} parent=1 // pred_check
      _
    $region27: #{_linear_fwd.1} parent=1 // pred_check_branch
      %87 = sbr.rel (0) target = $region29
    $region28: #{_linear_fwd.1} parent=1 // pred_region
      %89 = vsyncadd [#allocation4], 0
      %s91 = sshll.u32 [#allocation5], 4
      %s92 = int_to_ptr.vmem [resolvable:$true] %s91
      %s93 = sshll.u32 %s3, 4
      %s94 = int_to_ptr.hbm [resolvable:$true] %s93
      %96 = dma.vmem_to_hbm [thread:$0]  %s92, 128, %s94, [#allocation4]
    $region29: #{_linear_fwd.1} parent=1 // pred_fallthru
      _
    // Predicated region
    $region30: #{_linear_fwd.1} parent=1 // pred_check
      _
    $region31: #{_linear_fwd.1} parent=1 // pred_check_branch
      %98 = sbr.rel (0) target = $region33
    $region32: #{_linear_fwd.1} parent=1 // pred_region
      %100 = dma.done [#allocation4], 128
    $region33: #{_linear_fwd.1} parent=1 // pred_fallthru
      _
    %101 = vsyncpa [#allocation3], 1
    %102 = vsyncpa [#allocation4], 1

</llo_original>
